<compile_context>
chip_gen: v6e
topology: v6e:2x2x1
jax: 0.10.0
libtpu: 0.0.40
codegen_flags: <defaults>
</compile_context>

<pallas_src>
import functools

import jax
import jax.numpy as jnp
from jax.experimental import pallas as pl
from jax.experimental.pallas import tpu as pltpu

_MIB = 1024 * 1024


def _ce2d_kernel(x_ref, t_ref, o_ref, *, hw, accumulate):
    """One (batch, pixel-block) tile of the summed NLL.

    x_ref: (1, C, L)    logits block (classes on sublanes, pixels on lanes)
    t_ref: (1, 1, L)    int32 target class per pixel
    o_ref: (1, 1, 1, 1) float32 partial / accumulated sum
    """
    pj = pl.program_id(1)

    x = x_ref[0].astype(jnp.float32)          # (C, L)
    t = t_ref[0]                              # (1, L) int32
    c, l = x.shape

    # Which lanes of this block are real pixels (last block may be ragged).
    lane = jax.lax.broadcasted_iota(jnp.int32, (1, l), 1)
    valid = (pj * l + lane) < hw              # (1, L) bool

    # Numerically stable log-sum-exp over the class (sublane) axis.  Ragged
    # tail lanes are NOT pre-masked: the select before the final reduces keeps
    # any garbage (inf/NaN) in those lanes from reaching the block sum.
    m = jnp.max(x, axis=0, keepdims=True)                               # (1, L)
    lse = jnp.log(jnp.sum(jnp.exp(x - m), axis=0, keepdims=True)) + m   # (1, L)

    # Target-class one-hot via a broadcast compare against a (C, 1) iota; fold
    # the validity mask in so a single full reduce replaces the sublane gather
    # reduce + lane reduce pair.
    cls = jax.lax.broadcasted_iota(jnp.int32, (c, 1), 0)                # (C, 1)
    hit = (cls == t) & valid                                            # (C, L)

    lse_sum = jnp.sum(jnp.where(valid, lse, 0.0), keepdims=True)        # (1, 1)
    tgt_sum = jnp.sum(jnp.where(hit, x, 0.0), keepdims=True)            # (1, 1)
    block_sum = (lse_sum - tgt_sum).reshape(1, 1, 1, 1)

    if accumulate:
        # Pixel axis is a reduction: output block stays resident across j.
        @pl.when(pj == 0)
        def _():
            o_ref[...] = jnp.zeros_like(o_ref)

        o_ref[...] += block_sum
    else:
        o_ref[...] = block_sum


def _round_up(a, b):
    return (a + b - 1) // b * b


def _sublane_tile(itemsize):
    # Minimum second-minor tile: 8 for 4-byte, 16 for 2-byte, 32 for 1-byte.
    return (8 * 4) // itemsize


def _budgets():
    """(target real HBM bytes per step, padded double-buffered VMEM budget)."""
    try:
        info = pltpu.get_tpu_info()
        vmem = int(getattr(info, "vmem_capacity_bytes", 128 * _MIB))
    except Exception:  # pragma: no cover - conservative fallback
        vmem = 128 * _MIB
    if vmem <= 64 * _MIB:
        # v7x-class: 64 MiB VMEM / ~3.2 TB/s HBM. Bigger real blocks to
        # amortize the ~0.35 us per-step overhead, padded footprint well
        # under physical VMEM.
        return 6 * _MIB, 24 * _MIB
    # v5e / v6e: 128 MiB physical VMEM. 4 MiB real bytes reaches the
    # 85%+-of-roofline regime on v6e and stays in the 2-4 MiB band on v5e.
    return 4 * _MIB, 24 * _MIB


def _pixel_block(hw, c, itemsize, target_real_bytes, padded_budget_bytes):
    """Pixels-per-block L: multiple of 128 (or full pixel axis), sized from
    both the real HBM bytes per step and the PADDED double-buffered VMEM
    footprint (sublane padding of small C + int32 targets padded to 8 rows)."""
    if hw <= 128:
        return hw
    c_pad = _round_up(c, _sublane_tile(itemsize))
    padded_per_pixel = 2 * (c_pad * itemsize + 8 * 4)   # x2 double buffer
    real_per_pixel = c * itemsize + 4
    l = min(target_real_bytes // real_per_pixel,
            padded_budget_bytes // padded_per_pixel)
    l = max(128, min(l, hw))
    return (l // 128) * 128


def _vmem_limit_bytes(l, c, itemsize):
    c_pad = _round_up(c, _sublane_tile(itemsize))
    padded_in = 2 * (c_pad * itemsize + 8 * 4) * l      # double-buffered inputs
    limit = padded_in + 4 * _MIB                        # outputs + headroom
    return int(min(max(limit, 16 * _MIB), 48 * _MIB))   # safe on 64 MiB v7x


def cross_entropy_loss_2d(logits_nchw, targets_nhw):
    """Equivalent of CrossEntropyLoss2d()(inputs, targets):
       NLLLoss(log_softmax(inputs, dim=1), targets), weight=None,
       reduction='elementwise_mean' (mean over all N*H*W pixels)."""
    # TODO(synk): NLLLoss's default ignore_index=-100 is not handled; targets
    # are assumed to lie in [0, C).
    n, c, h, w = logits_nchw.shape
    hw = h * w
    itemsize = jnp.dtype(logits_nchw.dtype).itemsize

    x = logits_nchw.reshape(n, c, hw)                    # free: NCHW contiguous
    t = targets_nhw.reshape(n, 1, hw).astype(jnp.int32)  # lane-dense targets

    target_real, padded_budget = _budgets()
    l = _pixel_block(hw, c, itemsize, target_real, padded_budget)
    grid_p = pl.cdiv(hw, l)
    grid = (n, grid_p)

    # N > 1: reduce the pixel axis into one f32 per image (fewer tiny
    # writebacks, no wrapper-side partial-sum kernel); megacore shards batch.
    # N == 1: keep both axes parallel so megacore can shard the pixel axis.
    accumulate = n > 1
    kernel = functools.partial(_ce2d_kernel, hw=hw, accumulate=accumulate)

    if accumulate:
        out_shape = jax.ShapeDtypeStruct((n, 1, 1, 1), jnp.float32)
        out_specs = pl.BlockSpec((1, 1, 1, 1), lambda i, j: (i, 0, 0, 0))
        dims = ("parallel", "arbitrary")
    else:
        out_shape = jax.ShapeDtypeStruct((n, grid_p, 1, 1), jnp.float32)
        out_specs = pl.BlockSpec((1, 1, 1, 1), lambda i, j: (i, j, 0, 0))
        dims = ("parallel", "parallel")

    cost = pl.CostEstimate(
        flops=5 * n * c * hw,
        transcendentals=n * c * hw,
        bytes_accessed=n * c * hw * itemsize + n * hw * 4 + n * grid_p * 4,
    )

    partials = pl.pallas_call(
        kernel,
        out_shape=out_shape,
        grid_spec=pltpu.PrefetchScalarGridSpec(
            num_scalar_prefetch=0,
            grid=grid,
            in_specs=[
                pl.BlockSpec((1, c, l), lambda i, j: (i, 0, j)),
                pl.BlockSpec((1, 1, l), lambda i, j: (i, 0, j)),
            ],
            out_specs=out_specs,
        ),
        compiler_params=pltpu.CompilerParams(
            dimension_semantics=dims,
            vmem_limit_bytes=_vmem_limit_bytes(l, c, itemsize),
        ),
        cost_estimate=cost,
    )(x, t)

    # Mean over all N*H*W pixels. Two-stage divide keeps the denominator
    # exactly representable in f32 even for very large pixel counts.
    return (jnp.sum(partials) / jnp.float32(hw)) / jnp.float32(n)


def _reference(logits_nchw, targets_nhw):
    logp = jax.nn.log_softmax(logits_nchw.astype(jnp.float32), axis=1)
    onehot = jax.nn.one_hot(targets_nhw, logits_nchw.shape[1],
                            axis=1, dtype=jnp.float32)
    nll = -jnp.sum(logp * onehot, axis=1)   # (N, H, W)
    return jnp.mean(nll)


if __name__ == "__main__":
    key = jax.random.PRNGKey(0)
    k1, k2 = jax.random.split(key)

    N, C, H, W = 2, 4, 16, 16
    logits = jax.random.normal(k1, (N, C, H, W), dtype=jnp.float32)
    targets = jax.random.randint(k2, (N, H, W), 0, C, dtype=jnp.int32)

    loss = cross_entropy_loss_2d(logits, targets)
    loss = jax.block_until_ready(loss)

    ref = _reference(logits, targets)
    assert jnp.allclose(loss, ref, rtol=1e-5, atol=1e-5), (loss, ref)

    print("KERNEL_OK")
</pallas_src>

<mosaic_0001>
module attributes {stable_mosaic.version = 11 : i64} {
  func.func @_ce2d_kernel(%arg0: i32, %arg1: i32, %arg2: memref<1x4x256xf32, #tpu.memory_space<vmem>>, %arg3: memref<1x1x256xi32, #tpu.memory_space<vmem>>, %arg4: memref<1x1x1x1xf32, #tpu.memory_space<vmem>>) attributes {dimension_semantics = [#tpu.dimension_semantics<parallel>, #tpu.dimension_semantics<arbitrary>], iteration_bounds = array<i64: 2, 1>, scalar_prefetch = 0 : i64, scratch_operands = 0 : i64, tpu.core_type = #tpu.core_type<tc>, window_params = [{transform_indices = @transform_0, window_bounds = array<i64: 1, 4, 256>}, {transform_indices = @transform_1, window_bounds = array<i64: 1, 1, 256>}, {transform_indices = @transform_2, window_bounds = array<i64: 1, 1, 1, 1>}]} {
    %c0 = arith.constant 0 : index
    %c0_0 = arith.constant 0 : index
    %c0_1 = arith.constant 0 : index
    %0 = vector.load %arg2[%c0, %c0_0, %c0_1] : memref<1x4x256xf32, #tpu.memory_space<vmem>>, vector<1x4x256xf32>
    %1 = vector.shape_cast %0 : vector<1x4x256xf32> to vector<4x256xf32>
    %c0_2 = arith.constant 0 : index
    %c0_3 = arith.constant 0 : index
    %c0_4 = arith.constant 0 : index
    %2 = vector.load %arg3[%c0_2, %c0_3, %c0_4] : memref<1x1x256xi32, #tpu.memory_space<vmem>>, vector<1x1x256xi32>
    %3 = vector.shape_cast %2 : vector<1x1x256xi32> to vector<1x256xi32>
    %4 = tpu.iota {dimensions = array<i32: 1>} : vector<1x256xi32>
    %c256_i32 = arith.constant 256 : i32
    %5 = arith.muli %arg1, %c256_i32 : i32
    %6 = vector.broadcast %5 : i32 to vector<1x256xi32>
    %7 = arith.addi %6, %4 : vector<1x256xi32>
    %c256_i32_5 = arith.constant 256 : i32
    %8 = vector.broadcast %c256_i32_5 : i32 to vector<1x256xi32>
    %9 = arith.cmpi slt, %7, %8 : vector<1x256xi32>
    %cst = arith.constant dense<0xFF800000> : vector<256xf32>
    %10 = vector.multi_reduction <maximumf>, %1, %cst [0] : vector<4x256xf32> to vector<256xf32>
    %11 = vector.shape_cast %10 : vector<256xf32> to vector<1x256xf32>
    %12 = vector.broadcast %11 : vector<1x256xf32> to vector<4x256xf32>
    %13 = arith.subf %1, %12 : vector<4x256xf32>
    %14 = math.exp %13 : vector<4x256xf32>
    %cst_6 = arith.constant dense<0.000000e+00> : vector<256xf32>
    %15 = vector.multi_reduction <add>, %14, %cst_6 [0] : vector<4x256xf32> to vector<256xf32>
    %16 = vector.shape_cast %15 : vector<256xf32> to vector<1x256xf32>
    %17 = math.log %16 : vector<1x256xf32>
    %18 = arith.addf %17, %11 : vector<1x256xf32>
    %19 = tpu.iota {dimensions = array<i32: 0>} : vector<4x1xi32>
    %20 = vector.broadcast %19 : vector<4x1xi32> to vector<4x256xi32>
    %21 = vector.broadcast %3 : vector<1x256xi32> to vector<4x256xi32>
    %22 = arith.cmpi eq, %20, %21 : vector<4x256xi32>
    %23 = vector.broadcast %9 : vector<1x256xi1> to vector<4x256xi1>
    %24 = arith.andi %22, %23 : vector<4x256xi1>
    %cst_7 = arith.constant 0.000000e+00 : f32
    %25 = vector.broadcast %cst_7 : f32 to vector<1x256xf32>
    %26 = arith.select %9, %18, %25 : vector<1x256xi1>, vector<1x256xf32>
    %27 = vector.shape_cast %26 : vector<1x256xf32> to vector<1x1x256xf32>
    %cst_8 = arith.constant dense<0.000000e+00> : vector<1xf32>
    %28 = vector.multi_reduction <add>, %27, %cst_8 [1, 2] : vector<1x1x256xf32> to vector<1xf32>
    %29 = vector.shape_cast %28 : vector<1xf32> to vector<1x1x1xf32>
    %30 = vector.extract %29[0, 0, 0] : f32 from vector<1x1x1xf32>
    %31 = vector.broadcast %30 : f32 to vector<1x1xf32>
    %cst_9 = arith.constant 0.000000e+00 : f32
    %32 = vector.broadcast %cst_9 : f32 to vector<4x256xf32>
    %33 = arith.select %24, %1, %32 : vector<4x256xi1>, vector<4x256xf32>
    %34 = vector.shape_cast %33 : vector<4x256xf32> to vector<1x4x256xf32>
    %cst_10 = arith.constant dense<0.000000e+00> : vector<1xf32>
    %35 = vector.multi_reduction <add>, %34, %cst_10 [1, 2] : vector<1x4x256xf32> to vector<1xf32>
    %36 = vector.shape_cast %35 : vector<1xf32> to vector<1x1x1xf32>
    %37 = vector.extract %36[0, 0, 0] : f32 from vector<1x1x1xf32>
    %38 = vector.broadcast %37 : f32 to vector<1x1xf32>
    %39 = arith.subf %31, %38 : vector<1x1xf32>
    %40 = vector.shape_cast %39 : vector<1x1xf32> to vector<1x1x1x1xf32>
    %c0_i32 = arith.constant 0 : i32
    %41 = arith.cmpi eq, %arg1, %c0_i32 : i32
    %42 = arith.extui %41 : i1 to i32
    %c0_i32_11 = arith.constant 0 : i32
    %43 = arith.cmpi ne, %42, %c0_i32_11 : i32
    scf.if %43 {
      %cst_20 = arith.constant 0.000000e+00 : f32
      %47 = vector.broadcast %cst_20 : f32 to vector<1x1x1x1xf32>
      %c0_21 = arith.constant 0 : index
      %c0_22 = arith.constant 0 : index
      %c0_23 = arith.constant 0 : index
      %c0_24 = arith.constant 0 : index
      %48 = vector.load %arg4[%c0_21, %c0_22, %c0_23, %c0_24] : memref<1x1x1x1xf32, #tpu.memory_space<vmem>>, vector<1x1x1x1xf32>
      tpu.vector_store %arg4[%c0_21, %c0_22, %c0_23, %c0_24], %47 {strides = array<i32>} : memref<1x1x1x1xf32, #tpu.memory_space<vmem>>, vector<1x1x1x1xf32>,
    } else {
    }
    %c0_12 = arith.constant 0 : index
    %c0_13 = arith.constant 0 : index
    %c0_14 = arith.constant 0 : index
    %c0_15 = arith.constant 0 : index
    %44 = vector.load %arg4[%c0_12, %c0_13, %c0_14, %c0_15] : memref<1x1x1x1xf32, #tpu.memory_space<vmem>>, vector<1x1x1x1xf32>
    %45 = arith.addf %44, %40 : vector<1x1x1x1xf32>
    %c0_16 = arith.constant 0 : index
    %c0_17 = arith.constant 0 : index
    %c0_18 = arith.constant 0 : index
    %c0_19 = arith.constant 0 : index
    %46 = vector.load %arg4[%c0_16, %c0_17, %c0_18, %c0_19] : memref<1x1x1x1xf32, #tpu.memory_space<vmem>>, vector<1x1x1x1xf32>
    tpu.vector_store %arg4[%c0_16, %c0_17, %c0_18, %c0_19], %45 {strides = array<i32>} : memref<1x1x1x1xf32, #tpu.memory_space<vmem>>, vector<1x1x1x1xf32>,
    return
  }
  func.func @transform_0(%arg0: i32, %arg1: i32) -> (i32, i32, i32) {
    %c0_i32 = arith.constant 0 : i32
    %c0_i32_0 = arith.constant 0 : i32
    return %arg0, %c0_i32, %arg1 : i32, i32, i32
  }
  func.func @transform_1(%arg0: i32, %arg1: i32) -> (i32, i32, i32) {
    %c0_i32 = arith.constant 0 : i32
    %c0_i32_0 = arith.constant 0 : i32
    return %arg0, %c0_i32, %arg1 : i32, i32, i32
  }
  func.func @transform_2(%arg0: i32, %arg1: i32) -> (i32, i32, i32, i32) {
    %c0_i32 = arith.constant 0 : i32
    %c0_i32_0 = arith.constant 0 : i32
    %c0_i32_1 = arith.constant 0 : i32
    %c0_i32_2 = arith.constant 0 : i32
    return %arg0, %c0_i32, %c0_i32_0, %c0_i32_1 : i32, i32, i32, i32
  }
}

</mosaic_0001>

<llo_original>
// kernel: tpu_custom_call.1
$region0: #{tpu_custom_call.1}
  #allocation0 [shape = 'u32[]', space=smem, size = 0x4, offset = 0x4, fixed_abs, tag = 'smem constant byte address 0x4 - core index']
  #allocation1 [shape = 'u32[144,128]{1,0:T(1,128)}', space=vmem, size = 0x12000, scoped, tag = 'internal scratch']
  %s0 = inlined_call_operand.hbm [shape: f32[2,4,256], index: 0, kind: input, shape index: {}]
  %s1 = inlined_call_operand.hbm [shape: s32[2,1,256], index: 1, kind: input, shape index: {}]
  %s2 = inlined_call_operand.vmem [shape: f32[2,1,1,1], index: 2, kind: output, shape index: {}]
  %s3 = sld [smem:[#allocation0]]
  $region53: #{tpu_custom_call.1} parent=0
    _
  %s5 = ssub.s32 1, %s3
  %s6 = scalar_select 0, %s5, %s3
  $region1: #{tpu_custom_call.1} parent=0
    #allocation2 [shape = 'u8[8192]{0}', space=vmem, size = 0x2000, scoped, tag = 'input window, operand 0']
    #allocation3 [shape = 's32[2]{0}', space=sflag, size = 0x8, scoped, tag = 'scoped memory for tpu_custom_call.1']
    #allocation4 [shape = 'u8[2048]{0}', space=vmem, size = 0x800, scoped, tag = 'input window, operand 1']
    #allocation5 [shape = 's32[2]{0}', space=sflag, size = 0x8, scoped, tag = 'scoped memory for tpu_custom_call.1']
    %7 = vsyncpa [#allocation3], 0
    %s8 = scalar_lea.sflag [#allocation3], 1
    %9 = vsyncpa %s8, 0
    %10 = vsyncpa [#allocation5], 0
    %s11 = scalar_lea.sflag [#allocation5], 1
    %12 = vsyncpa %s11, 0
    loop: start=0, step=1, limit=4
    $region2: #{tpu_custom_call.1} parent=1 // loop_pre_header
      _
    $region3: #{tpu_custom_call.1} parent=1 // loop_header
      %s14 = sphi 0, %s18
      %p15 = scmp.ge.s32.totalorder %s14, 4
      %s21 = sphi 0, %s33
      %s22 = sphi 0, %s29
      %s23 = sphi 0, %s21
      %s24 = sphi 0, %s22
      %s25 = sphi 0, %s23
      %s26 = sphi 0, %s24
      %s38 = sphi 0, %s40
      %s41 = sphi 0, %s38
      %s42 = sphi 0, %s41
      %s58 = sphi 0, %s42
      %s66 = sphi 0, %s68
      %s69 = sphi 0, %s66
      %s70 = sphi 0, %s69
      %s86 = sphi 0, %s70
      %s92 = sphi 0, %s94
      %s95 = sphi 0, %s92
      %s96 = sphi 0, %s95
      %s112 = sphi 0, %s96
    $region4: #{tpu_custom_call.1} parent=1 // loop_header_branch
      %17 = sbr.rel (%p15) target = $region8
    $region5: #{tpu_custom_call.1} parent=1 // loop_body
      %s19 = ssub.s32 %s14, 1
      %s20 = ssub.s32 %s14, 2
      %s27 = sadd.s32 1, %s22
      %p28 = scmp.ge.s32.totalorder %s27, 1
      %s29 = scalar_select %p28, 0, %s27
      %s30 = sadd.s32 1, %s21
      %s31 = scalar_select %p28, %s30, %s21
      %p32 = scmp.ge.s32.totalorder %s31, 2
      %s33 = scalar_select %p32, 0, %s31
      %s34 = ssub.s32 %s21, %s33
      %s35 = ssub.s32 %s22, %s29
      %s36 = sor.u32 %s34, %s35
      %p37 = scmp.eq.s32.totalorder %s36, 0
      %s39 = sadd.s32 %s38, 1
      %s40 = scalar_select %p37, %s38, %s39
      %p43 = pneg %p37
      %p44 = scmp.eq.s32.totalorder %s14, 1
      %p45 = por %p43, %p44
      %p46 = scmp.ne.s32.totalorder %s38, %s41
      %p47 = scmp.eq.s32.totalorder %s14, 0
      %p48 = por %p46, %p47
      %p49 = scmp.ne.s32.totalorder %s38, %s41
      %p50 = scmp.eq.s32.totalorder %s19, 1
      %p51 = por %p49, %p50
      %p52 = scmp.ne.s32.totalorder %s41, %s42
      %p53 = scmp.eq.s32.totalorder %s19, 0
      %p54 = por %p52, %p53
      %p55 = scmp.ne.s32.totalorder %s41, %s42
      %p56 = scmp.eq.s32.totalorder %s20, 1
      %p57 = por %p55, %p56
      %p59 = scmp.ne.s32.totalorder %s42, %s58
      %p60 = scmp.eq.s32.totalorder %s20, 0
      %p61 = por %p59, %p60
      %s62 = ssub.s32 %s21, %s33
      %s63 = ssub.s32 %s22, %s29
      %s64 = sor.u32 %s62, %s63
      %p65 = scmp.eq.s32.totalorder %s64, 0
      %s67 = sadd.s32 %s66, 1
      %s68 = scalar_select %p65, %s66, %s67
      %p71 = pneg %p65
      %p72 = scmp.eq.s32.totalorder %s14, 1
      %p73 = por %p71, %p72
      %p74 = scmp.ne.s32.totalorder %s66, %s69
      %p75 = scmp.eq.s32.totalorder %s14, 0
      %p76 = por %p74, %p75
      %p77 = scmp.ne.s32.totalorder %s66, %s69
      %p78 = scmp.eq.s32.totalorder %s19, 1
      %p79 = por %p77, %p78
      %p80 = scmp.ne.s32.totalorder %s69, %s70
      %p81 = scmp.eq.s32.totalorder %s19, 0
      %p82 = por %p80, %p81
      %p83 = scmp.ne.s32.totalorder %s69, %s70
      %p84 = scmp.eq.s32.totalorder %s20, 1
      %p85 = por %p83, %p84
      %p87 = scmp.ne.s32.totalorder %s70, %s86
      %p88 = scmp.eq.s32.totalorder %s20, 0
      %p89 = por %p87, %p88
      %s90 = ssub.s32 %s21, %s33
      %p91 = scmp.eq.s32.totalorder %s90, 0
      %s93 = sadd.s32 %s92, 1
      %s94 = scalar_select %p91, %s92, %s93
      %p97 = pneg %p91
      %p98 = scmp.eq.s32.totalorder %s14, 1
      %p99 = por %p97, %p98
      %p100 = scmp.ne.s32.totalorder %s92, %s95
      %p101 = scmp.eq.s32.totalorder %s14, 0
      %p102 = por %p100, %p101
      %p103 = scmp.ne.s32.totalorder %s92, %s95
      %p104 = scmp.eq.s32.totalorder %s19, 1
      %p105 = por %p103, %p104
      %p106 = scmp.ne.s32.totalorder %s95, %s96
      %p107 = scmp.eq.s32.totalorder %s19, 0
      %p108 = por %p106, %p107
      %p109 = scmp.ne.s32.totalorder %s95, %s96
      %p110 = scmp.eq.s32.totalorder %s20, 1
      %p111 = por %p109, %p110
      %p113 = scmp.ne.s32.totalorder %s96, %s112
      %p114 = scmp.eq.s32.totalorder %s20, 0
      %p115 = por %p113, %p114
      %p116 = scmp.le.s32.totalorder 1, %s14
      %p117 = scmp.lt.s32.totalorder %s14, 3
      %p118 = pnand %p116, %p117
      %p119 = pneg %p118
      // Predicated region
      $region9: #{tpu_custom_call.1} parent=5 // pred_check
        _
      $region10: #{tpu_custom_call.1} parent=5 // pred_check_branch
        %121 = sbr.rel (%p118) target = $region12
      $region11: #{tpu_custom_call.1} parent=5 // pred_region
        %s122 = ssub.s32 %s14, 1
      $region12: #{tpu_custom_call.1} parent=5 // pred_fallthru
        _
      %p123 = scmp.lt.s32.totalorder %s14, 2
      // Predicated region
      $region13: #{tpu_custom_call.1} parent=5 // pred_check
        %p124 = pneg %p123
      $region14: #{tpu_custom_call.1} parent=5 // pred_check_branch
        %126 = sbr.rel (%p124) target = $region16
      $region15: #{tpu_custom_call.1} parent=5 // pred_region
        // Predicated region
        $region17: #{tpu_custom_call.1} parent=15 // pred_check
          %p127 = pneg %p48
        $region18: #{tpu_custom_call.1} parent=15 // pred_check_branch
          %129 = sbr.rel (%p127) target = $region20
        $region19: #{tpu_custom_call.1} parent=15 // pred_region
          %s130 = sand.u32 %s38, 1
          %s131 = scalar_lea.sflag [#allocation3], %s130
          %s132 = sand.u32 %s38, 1
          %s133 = smul.addr %s132, 8
          %s134 = scalar_lea.vmem [#allocation2], %s133
          %s135 = smul.u32 2, %s22
          %s137 = ssub.s32 128, 128
          %138 = vsyncadd %s131, %s137
          %s139 = smul.addr %s21, 2
          %s140 = sadd.s32 %s135, %s139
          %s141 = smul.addr %s140, 64
          %s142 = scalar_lea.hbm %s0, %s141
          %s144 = sshll.u32 %s134, 4
          %s145 = int_to_ptr.vmem [resolvable:$true] %s144
          %147 = dma.hbm_to_vmem [thread:$0]  %s142, 128, %s145, %s131
        $region20: #{tpu_custom_call.1} parent=15 // pred_fallthru
          _
        // Predicated region
        $region21: #{tpu_custom_call.1} parent=15 // pred_check
          %p148 = pneg %p76
        $region22: #{tpu_custom_call.1} parent=15 // pred_check_branch
          %150 = sbr.rel (%p148) target = $region24
        $region23: #{tpu_custom_call.1} parent=15 // pred_region
          %s151 = sand.u32 %s66, 1
          %s152 = scalar_lea.sflag [#allocation5], %s151
          %s153 = sand.u32 %s66, 1
          %s154 = smul.addr %s153, 2
          %s155 = scalar_lea.vmem [#allocation4], %s154
          %s156 = smul.u32 2, %s22
          %s158 = ssub.s32 32, 32
          %159 = vsyncadd %s152, %s158
          %s160 = smul.addr %s21, 2
          %s161 = sadd.s32 %s156, %s160
          %s162 = smul.addr %s161, 16
          %s163 = scalar_lea.hbm %s1, %s162
          %s165 = sshll.u32 %s155, 4
          %s166 = int_to_ptr.vmem [resolvable:$true] %s165
          %168 = dma.hbm_to_vmem [thread:$0]  %s163, 32, %s166, %s152
        $region24: #{tpu_custom_call.1} parent=15 // pred_fallthru
          _
      $region16: #{tpu_custom_call.1} parent=5 // pred_fallthru
        _
      %p169 = scmp.le.s32.totalorder 1, %s14
      %p170 = scmp.lt.s32.totalorder %s14, 3
      %p171 = pnand %p169, %p170
      %p172 = pneg %p171
      // Predicated region
      $region25: #{tpu_custom_call.1} parent=5 // pred_check
        _
      $region26: #{tpu_custom_call.1} parent=5 // pred_check_branch
        %174 = sbr.rel (%p171) target = $region28
      $region27: #{tpu_custom_call.1} parent=5 // pred_region
        %s175 = ssub.s32 %s14, 1
        %s176 = sand.u32 %s41, 1
        %s177 = scalar_lea.sflag [#allocation3], %s176
        %s178 = sand.u32 %s41, 1
        %s179 = smul.addr %s178, 8
        %s180 = scalar_lea.vmem [#allocation2], %s179
        // Predicated region
        $region29: #{tpu_custom_call.1} parent=27 // pred_check
          %p181 = pneg %p54
        $region30: #{tpu_custom_call.1} parent=27 // pred_check_branch
          %183 = sbr.rel (%p181) target = $region32
        $region31: #{tpu_custom_call.1} parent=27 // pred_region
          %184 = dma.done %s177, 128
        $region32: #{tpu_custom_call.1} parent=27 // pred_fallthru
          _
        %s185 = sand.u32 %s69, 1
        %s186 = scalar_lea.sflag [#allocation5], %s185
        %s187 = sand.u32 %s69, 1
        %s188 = smul.addr %s187, 2
        %s189 = scalar_lea.vmem [#allocation4], %s188
        // Predicated region
        $region33: #{tpu_custom_call.1} parent=27 // pred_check
          %p190 = pneg %p82
        $region34: #{tpu_custom_call.1} parent=27 // pred_check_branch
          %192 = sbr.rel (%p190) target = $region36
        $region35: #{tpu_custom_call.1} parent=27 // pred_region
          %193 = dma.done %s186, 32
        $region36: #{tpu_custom_call.1} parent=27 // pred_fallthru
          _
        %s194 = sand.u32 %s41, 1
        %s195 = scalar_lea.sflag [#allocation3], %s194
        %s196 = sand.u32 %s41, 1
        %s197 = smul.addr %s196, 8
        %s198 = scalar_lea.vmem [#allocation2], %s197
        %p199 = pneg %p54
        %p200 = pneg %p51
        %s201 = sand.u32 %s69, 1
        %s202 = scalar_lea.sflag [#allocation5], %s201
        %s203 = sand.u32 %s69, 1
        %s204 = smul.addr %s203, 2
        %s205 = scalar_lea.vmem [#allocation4], %s204
        %p206 = pneg %p82
        %p207 = pneg %p79
        %p208 = pneg %p108
        %p209 = pneg %p105
        %p210 = scmp.lt.s32.totalorder %s23, 1
        %s211 = scalar_select %p210, %s23, 1
        %s212 = scalar_lea.vmem %s2, %s211
        %s213 = smul.u32 2, %s24
        %s214 = smul.u32 2, %s24
        %p215 = scmp.lt.s32.totalorder %s23, 1
        %s216 = scalar_select %p215, %s23, 1
        %s217 = scalar_lea.vmem %s2, %s216
        %v218 = vld [vmem:[%s180] sm:$0xff]
        %v219 = vld [vmem:[%s189] sm:$0x3]
        %v220 = vlaneseq
        %v221 = vand.u32 %v220, 127
        %v222 = vadd.s32 %v221, 128
        %s223 = smul.u32 %s24, 256
        %v224 = vstv %s223
        %v225 = vadd.s32 %v224, %v221
        %v226 = vadd.s32 %v224, %v222
        %vm227 = vcmp.lt.s32.totalorder %v225, 256
        %vm228 = vcmp.lt.s32.totalorder %v226, 256
        %v230 = vcombine.high %v218, %v218
        %vm232 = vcmask 1043456
        %v233 = vsel %vm232, %v218, -inf
        %v234 = vrot.slane %v233, 4
        %v235 = vmax.f32 %v233, %v234
        %v236 = vrot.slane %v235, 2
        %v237 = vmax.f32 %v235, %v236
        %v238 = vrot.slane %v237, 1
        %v239 = vmax.f32 %v237, %v238
        %v240 = vsel %vm232, %v230, -inf
        %v241 = vrot.slane %v240, 4
        %v242 = vmax.f32 %v240, %v241
        %v243 = vrot.slane %v242, 2
        %v244 = vmax.f32 %v242, %v243
        %v245 = vrot.slane %v244, 1
        %v246 = vmax.f32 %v244, %v245
        %v249 = vcombine.low %v239, %v246
        %v251 = vsub.f32 %v218, %v249
        %v252 = vmul.f32 %v251, 1.442695
        %v253 = vpow.pop %v252
        %v255 = vcombine.high %v253, %v253
        %v257 = vsel %vm232, %v253, 0.0
        %v258 = vrot.slane %v257, 4
        %v259 = vadd.f32 %v257, %v258
        %v260 = vrot.slane %v259, 2
        %v261 = vadd.f32 %v259, %v260
        %v262 = vrot.slane %v261, 1
        %v263 = vadd.f32 %v261, %v262
        %v264 = vsel %vm232, %v255, 0.0
        %v265 = vrot.slane %v264, 4
        %v266 = vadd.f32 %v264, %v265
        %v267 = vrot.slane %v266, 2
        %v268 = vadd.f32 %v266, %v267
        %v269 = vrot.slane %v268, 1
        %v270 = vadd.f32 %v268, %v269
        %v271 = vlog2.pop %v263
        %v272 = vmul.f32 %v271, 0.6931472
        %v273 = vlog2.pop %v270
        %v274 = vmul.f32 %v273, 0.6931472
        %v275 = vadd.f32 %v272, %v239
        %v276 = vadd.f32 %v274, %v246
        %v277 = vlaneseq
        %v278 = vshrl.u32 %v277, 7
        %v279 = vlaneseq
        %v280 = vshrl.u32 %v279, 7
        %v281 = vsub.s32 0, %v280
        %v282 = vrot.slane %v219, %v281
        %v283 = vlaneseq
        %v284 = vshrl.u32 %v283, 7
        %v285 = vsub.s32 1, %v284
        %v286 = vrot.slane %v219, %v285
        %vm287 = vcmp.eq.s32.totalorder %v278, %v282
        %vm288 = vcmp.eq.s32.totalorder %v278, %v286
        %v289 = vsel %vm227, 1, 0
        %v290 = vsel %vm228, 1, 0
        %vm291 = vcmp.eq.s32.totalorder %v289, 1
        %vm292 = vcmp.eq.s32.totalorder %v290, 1
        %vm293 = vmand %vm287, %vm291
        %vm294 = vmand %vm288, %vm292
        %v295 = vsel %vm227, %v275, 0.0
        %v296 = vsel %vm228, %v276, 0.0
        %vm297 = vcmask 1040384
        %v298 = vsel %vm297, %v295, 0.0
        %v299 = vsel %vm297, %v296, 0.0
        %v300 = vadd.f32 %v298, %v299
        %301 = vadd.xlane.f32.xlu0 %v300
        %v302 = vpop.xlane.xlu0 %301
        %v303 = vrot.slane %v302, 4
        %v304 = vadd.f32 %v302, %v303
        %v305 = vrot.slane %v304, 2
        %v306 = vadd.f32 %v304, %v305
        %v307 = vrot.slane %v306, 1
        %v308 = vadd.f32 %v306, %v307
        %s309 = vtos %v308
        %v310 = vstv %s309
        %v311 = vsel %vm293, %v218, 0.0
        %v312 = vsel %vm294, %v230, 0.0
        %v313 = vsel %vm232, %v311, 0.0
        %v314 = vsel %vm232, %v312, 0.0
        %v315 = vadd.f32 %v313, %v314
        %316 = vadd.xlane.f32.xlu0 %v315
        %v317 = vpop.xlane.xlu0 %316
        %v318 = vrot.slane %v317, 4
        %v319 = vadd.f32 %v317, %v318
        %v320 = vrot.slane %v319, 2
        %v321 = vadd.f32 %v319, %v320
        %v322 = vrot.slane %v321, 1
        %v323 = vadd.f32 %v321, %v322
        %s324 = vtos %v323
        %v325 = vstv %s324
        %v326 = vsub.f32 %v310, %v325
        %p327 = scmp.eq.s32.totalorder %s24, 0
        // Predicated region
        $region37: #{tpu_custom_call.1} parent=27 // pred_check
          %p328 = pneg %p327
        $region38: #{tpu_custom_call.1} parent=27 // pred_check_branch
          %330 = sbr.rel (%p328) target = $region40
        $region39: #{tpu_custom_call.1} parent=27 // pred_region
          %vm331 = vcmask 0
          %332 = vst.msk [vmem:[%s217] sm:$0x1] %vm331, 0.0
        $region40: #{tpu_custom_call.1} parent=27 // pred_fallthru
          _
        %v333 = vld [vmem:[%s217] sm:$0x1]
        %v334 = vadd.f32 %v333, %v326
        %vm335 = vcmask 0
        %336 = vst.msk [vmem:[%s217] sm:$0x1] %vm335, %v334
        %p337 = scmp.lt.s32.totalorder %s23, 1
        %s338 = scalar_select %p337, %s23, 1
        %s339 = scalar_lea.vmem %s2, %s338
        // Predicated region
        $region41: #{tpu_custom_call.1} parent=27 // pred_check
          %p340 = pneg %p105
        $region42: #{tpu_custom_call.1} parent=27 // pred_check_branch
          %342 = sbr.rel (%p340) target = $region44
        $region43: #{tpu_custom_call.1} parent=27 // pred_region
          _
        $region44: #{tpu_custom_call.1} parent=27 // pred_fallthru
          _
      $region28: #{tpu_custom_call.1} parent=5 // pred_fallthru
        _
      %p343 = scmp.le.s32.totalorder 2, %s14
      // Predicated region
      $region45: #{tpu_custom_call.1} parent=5 // pred_check
        %p344 = pneg %p343
      $region46: #{tpu_custom_call.1} parent=5 // pred_check_branch
        %346 = sbr.rel (%p344) target = $region48
      $region47: #{tpu_custom_call.1} parent=5 // pred_region
        %s347 = ssub.s32 %s14, 2
        // Predicated region
        $region49: #{tpu_custom_call.1} parent=47 // pred_check
          %p348 = pneg %p111
        $region50: #{tpu_custom_call.1} parent=47 // pred_check_branch
          %350 = sbr.rel (%p348) target = $region52
        $region51: #{tpu_custom_call.1} parent=47 // pred_region
          %p351 = scmp.lt.s32.totalorder %s25, 1
          %s352 = scalar_select %p351, %s25, 1
          %s353 = scalar_lea.vmem %s2, %s352
        $region52: #{tpu_custom_call.1} parent=47 // pred_fallthru
          _
      $region48: #{tpu_custom_call.1} parent=5 // pred_fallthru
        _
    $region6: #{tpu_custom_call.1} parent=1 // loop_footer
      %s18 = sadd.s32 1, %s14
    $region7: #{tpu_custom_call.1} parent=1 // loop_footer_branch
      %13 = sbr.rel target = $region3
    $region8: #{tpu_custom_call.1} parent=1 // loop_exit
      _
    %354 = vsyncpa [#allocation3], 1
    %s355 = scalar_lea.sflag [#allocation3], 1
    %356 = vsyncpa %s355, 1
    %357 = vsyncpa [#allocation5], 1
    %s358 = scalar_lea.sflag [#allocation5], 1
    %359 = vsyncpa %s358, 1

</llo_original>
